<compile_context>
chip_gen: v6e
topology: v6e:2x2x1
jax: 0.10.0
libtpu: 0.0.40
codegen_flags: <defaults>
</compile_context>

<pallas_src>
import functools
import math

import jax
import jax.numpy as jnp
from jax.experimental import pallas as pl
from jax.experimental.pallas import tpu as pltpu


# ----------------------------------------------------------------- PE buffer (register_buffer)

def make_positional_encoding(d_model: int, max_seq_length: int,
                             dtype=jnp.float32) -> jnp.ndarray:
    """Sinusoidal PE buffer, shape (1, max_seq_length, d_model), built directly in `dtype`.

    Build it once in the activation dtype so the forward path never needs a per-call
    whole-buffer cast.  Requires even d_model (the PyTorch module also fails for odd).
    Note: with bf16 the add is bf16+bf16 (PyTorch keeps a f32 buffer and downcasts after);
    the difference is below normal bf16 tolerance.
    """
    if d_model % 2 != 0:
        raise ValueError("d_model must be even")
    position = jnp.arange(0, max_seq_length, dtype=jnp.float32)[:, None]             # (S, 1)
    div_term = jnp.exp(
        jnp.arange(0, d_model, 2, dtype=jnp.float32) * (-(math.log(10000.0) / d_model))
    )                                                                                  # (d/2,)
    angles = position * div_term                                                       # (S, d/2)
    # interleave: even columns = sin, odd columns = cos (matches pe[:,0::2]/pe[:,1::2])
    pe = jnp.stack([jnp.sin(angles), jnp.cos(angles)], axis=-1)                        # (S, d/2, 2)
    pe = pe.reshape(max_seq_length, d_model)                                           # (S, d)
    return pe[None, :, :].astype(dtype)                                                # (1, S, d)


# --------------------------------------------------------------------------------- kernel body

def _bcast_add_kernel(x_ref, pe_ref, o_ref):
    # Pure VPU elementwise add.  The pe block has a leading dim of 1 and broadcasts over the
    # batch rows folded into the x/out block.  Works for both the 3-D (bt, ts, D) blocks and
    # the flat lane-dense (bt, tf) blocks, and for the 2-D-input broadcast case (bt, 1, D).
    o_ref[...] = (x_ref[...] + pe_ref[...]).astype(o_ref.dtype)


# -------------------------------------------------------------------------- tiling / VMEM utils

def _sublane(itemsize: int) -> int:
    return max(8, 32 // max(1, itemsize))     # 8 (f32), 16 (bf16), 32 (int8/fp8)


@functools.lru_cache(maxsize=1)
def _budgets():
    """Per-generation (per-tile byte budget, vmem_limit ceiling)."""
    try:
        info = pltpu.get_tpu_info()
        cap = int(getattr(info, "vmem_capacity_bytes", 0)) or (64 << 20)
    except Exception:  # pragma: no cover - conservative fallback
        cap = 64 << 20
    if cap >= (128 << 20):          # v5e / v6e: 128 MiB VMEM -> bigger tiles, high ceiling
        return 4 << 20, 96 << 20
    return 2 << 20, 48 << 20        # v7x: 64 MiB/TC -> stay well under physical


def _vmem_limit(per_tile_total_bytes: int, ceiling: int) -> int:
    # double-buffered x/pe/out blocks + compiler headroom; always above v5e's 16 MiB default.
    want = 3 * per_tile_total_bytes + (4 << 20)
    return int(max(24 << 20, min(want, ceiling)))


# --------------------------------------------------------------------------------- pallas calls

def _pe_add_flat(x2: jnp.ndarray, pe_flat: jnp.ndarray, donate_x: bool) -> jnp.ndarray:
    """Lane-dense path for d_model < 128.  x2: (B, F), pe_flat: (1, F), F = S*d_model."""
    B, F = x2.shape
    dtype = x2.dtype
    itemsize = jnp.dtype(dtype).itemsize
    sub = _sublane(itemsize)
    tile_budget, ceiling = _budgets()

    # Batch rows per block (sublane dim): full B unless that alone blows the budget.
    if B <= sub or B * 128 * itemsize <= tile_budget:
        bt = B
    else:
        bt = max(sub, (min(B, tile_budget // (128 * itemsize)) // sub) * sub)

    # Flat-axis tile (lane dim): multiple of 128, sized against the budget.
    if F <= 128:
        tf = F
    else:
        tf = max(128, min((tile_budget // max(1, bt * itemsize)) // 128 * 128,
                          (F // 128) * 128))

    f_tiles = pl.cdiv(F, tf)
    b_tiles = pl.cdiv(B, bt)
    tile_total = (2 * bt * tf + tf) * itemsize

    kwargs = {}
    if donate_x:
        kwargs["input_output_aliases"] = {0: 0}

    return pl.pallas_call(
        _bcast_add_kernel,
        out_shape=jax.ShapeDtypeStruct((B, F), dtype),
        grid_spec=pltpu.PrefetchScalarGridSpec(
            num_scalar_prefetch=0,
            grid=(f_tiles, b_tiles),                       # batch innermost -> pe tile resident
            in_specs=[
                pl.BlockSpec((bt, tf), lambda f, b: (b, f)),
                pl.BlockSpec((1, tf), lambda f, b: (0, f)),   # depends only on f
            ],
            out_specs=pl.BlockSpec((bt, tf), lambda f, b: (b, f)),
        ),
        compiler_params=pltpu.CompilerParams(
            dimension_semantics=("parallel", "parallel"),
            vmem_limit_bytes=_vmem_limit(tile_total, ceiling),
        ),
        **kwargs,
    )(x2, pe_flat)


def _pe_add_3d(x3: jnp.ndarray, pe: jnp.ndarray, s_out: int, donate_x: bool) -> jnp.ndarray:
    """General path.  x3: (B, Sx, D) with Sx in {s_out, 1}; pe: (1, max_seq, D), dtype matching."""
    B, Sx, D = x3.shape
    dtype = x3.dtype
    itemsize = jnp.dtype(dtype).itemsize
    sub = _sublane(itemsize)
    tile_budget, ceiling = _budgets()
    row_bytes = D * itemsize

    if s_out < sub:
        # Tiny sequence: the seq block must equal the full (sliced) pe seq dim.
        ts = s_out
        bt = max(1, min(B, tile_budget // max(1, ts * row_bytes)))
        pe = pe[:, :s_out, :]
    else:
        s_ceil = pl.cdiv(s_out, sub) * sub
        rows = max(sub, (tile_budget // max(1, row_bytes)) // sub * sub)
        ts = min(rows, s_ceil)
        # Fold batch into the block once the whole sequence fits in one tile,
        # amortizing the fixed per-grid-step pipeline overhead.
        bt = max(1, min(B, tile_budget // max(1, ts * row_bytes))) if ts >= s_ceil else 1

    s_tiles = pl.cdiv(s_out, ts)
    b_tiles = pl.cdiv(B, bt)

    if Sx > 1:
        x_block = (bt, ts, D)
        x_index = lambda s, b: (b, s, 0)
        x_rows = ts
    else:
        x_block = (bt, 1, D)                              # 2-D input: broadcast over seq in-kernel
        x_index = lambda s, b: (b, 0, 0)
        x_rows = 1

    tile_total = (bt * x_rows * D + ts * D + bt * ts * D) * itemsize

    kwargs = {}
    if donate_x and Sx == s_out:
        kwargs["input_output_aliases"] = {0: 0}

    return pl.pallas_call(
        _bcast_add_kernel,
        out_shape=jax.ShapeDtypeStruct((B, s_out, D), dtype),
        grid_spec=pltpu.PrefetchScalarGridSpec(
            num_scalar_prefetch=0,
            grid=(s_tiles, b_tiles),                      # batch innermost -> pe tile resident
            in_specs=[
                pl.BlockSpec(x_block, x_index),
                pl.BlockSpec((1, ts, D), lambda s, b: (0, s, 0)),   # depends only on s
            ],
            out_specs=pl.BlockSpec((bt, ts, D), lambda s, b: (b, s, 0)),
        ),
        compiler_params=pltpu.CompilerParams(
            dimension_semantics=("parallel", "parallel"),
            vmem_limit_bytes=_vmem_limit(tile_total, ceiling),
        ),
        **kwargs,
    )(x3, pe)


# ---------------------------------------------------------------------------------- forward API

def positional_encoding_forward(x: jnp.ndarray, pe: jnp.ndarray,
                                donate_x: bool = False) -> jnp.ndarray:
    """Exact semantics of PositionalEncoding.forward.

    pe: (1, max_seq_length, d_model) — build it with make_positional_encoding(dtype=x.dtype)
        so no per-call cast is needed.
    x:  3D (B, S, d_model)  -> x + pe[:, :S]
        2D (B, d_model)     -> x.unsqueeze(1) + pe[:, :x.shape[1]]  (PyTorch quirk: sliced by
                               d_model, silently clipped to max_seq_length)
    donate_x: alias the output onto x (only when shapes/dtypes match); caller must not reuse x.
    """
    max_seq, d = pe.shape[1], pe.shape[2]
    if pe.dtype != x.dtype:
        # Fallback only: prefer prebuilding pe in the activation dtype (this is a whole-buffer
        # HBM pass every call otherwise).
        pe = pe.astype(x.dtype)

    if x.ndim == 3:
        B, S, D = x.shape
        if D != d:
            raise ValueError("last dim of x must equal d_model")
        if S > max_seq:
            raise ValueError("sequence length exceeds max_seq_length")
        if D < 128:
            # Lane-dense flat layout (full-width stores instead of masked vst.msk).
            pe_flat = pe[:, :S, :].reshape(1, S * D)
            out = _pe_add_flat(x.reshape(B, S * D), pe_flat, donate_x)
            return out.reshape(B, S, D)
        return _pe_add_3d(x, pe, S, donate_x)
    elif x.ndim == 2:
        if x.shape[1] != d:
            raise ValueError("last dim of x must equal d_model")
        s_out = min(x.shape[1], max_seq)
        return _pe_add_3d(x[:, None, :], pe, s_out, donate_x=False)
    else:
        raise ValueError("Input tensor must be 2D or 3D")


# --------------------------------------------------------------------------------------- demo

if __name__ == "__main__":
    # Small shapes consistent with the module (scaled down from d_model=1024, max_seq=512)
    d_model = 32
    max_seq_length = 16
    batch = 2
    seq = 8

    key = jax.random.PRNGKey(0)
    k1, k2 = jax.random.split(key)

    # pe built directly in the activation dtype -> no per-call cast
    pe = make_positional_encoding(d_model, max_seq_length, dtype=jnp.float32)

    # 3D path
    x3 = jax.random.normal(k1, (batch, seq, d_model), dtype=jnp.float32)
    out3 = jax.block_until_ready(positional_encoding_forward(x3, pe))
    ref3 = x3 + pe[:, :seq, :]
    assert out3.shape == (batch, seq, d_model)
    assert jnp.allclose(out3, ref3, atol=1e-6, rtol=1e-6)

    # 2D path: (B, d_model) -> x[:, None, :] + pe[:, :d_model] (clipped to max_seq_length)
    x2 = jax.random.normal(k2, (batch, d_model), dtype=jnp.float32)
    out2 = jax.block_until_ready(positional_encoding_forward(x2, pe))
    ref2 = x2[:, None, :] + pe[:, : min(d_model, max_seq_length), :]
    assert out2.shape == ref2.shape
    assert jnp.allclose(out2, ref2, atol=1e-6, rtol=1e-6)

    # bf16 activations: pe prebuilt in bf16 (no per-call cast, half the pe DMA bytes)
    pe_bf = make_positional_encoding(d_model, max_seq_length, dtype=jnp.bfloat16)
    x3_bf = x3.astype(jnp.bfloat16)
    out_bf = jax.block_until_ready(positional_encoding_forward(x3_bf, pe_bf))
    ref_bf = x3_bf + pe_bf[:, :seq, :]
    assert out_bf.dtype == jnp.bfloat16
    assert jnp.allclose(out_bf.astype(jnp.float32), ref_bf.astype(jnp.float32),
                        atol=1e-2, rtol=1e-2)

    print("KERNEL_OK")
</pallas_src>

<mosaic_0001>
module attributes {stable_mosaic.version = 11 : i64} {
  func.func @_bcast_add_kernel(%arg0: i32, %arg1: i32, %arg2: memref<2x256xf32, #tpu.memory_space<vmem>>, %arg3: memref<1x256xf32, #tpu.memory_space<vmem>>, %arg4: memref<2x256xf32, #tpu.memory_space<vmem>>) attributes {dimension_semantics = [#tpu.dimension_semantics<parallel>, #tpu.dimension_semantics<parallel>], iteration_bounds = array<i64: 1, 1>, scalar_prefetch = 0 : i64, scratch_operands = 0 : i64, tpu.core_type = #tpu.core_type<tc>, window_params = [{transform_indices = @transform_0, window_bounds = array<i64: 2, 256>}, {transform_indices = @transform_1, window_bounds = array<i64: 1, 256>}, {transform_indices = @transform_2, window_bounds = array<i64: 2, 256>}]} {
    %c0 = arith.constant 0 : index
    %c0_0 = arith.constant 0 : index
    %0 = vector.load %arg2[%c0, %c0_0] : memref<2x256xf32, #tpu.memory_space<vmem>>, vector<2x256xf32>
    %c0_1 = arith.constant 0 : index
    %c0_2 = arith.constant 0 : index
    %1 = vector.load %arg3[%c0_1, %c0_2] : memref<1x256xf32, #tpu.memory_space<vmem>>, vector<1x256xf32>
    %2 = vector.broadcast %1 : vector<1x256xf32> to vector<2x256xf32>
    %3 = arith.addf %0, %2 : vector<2x256xf32>
    %c0_3 = arith.constant 0 : index
    %c0_4 = arith.constant 0 : index
    %4 = vector.load %arg4[%c0_3, %c0_4] : memref<2x256xf32, #tpu.memory_space<vmem>>, vector<2x256xf32>
    tpu.vector_store %arg4[%c0_3, %c0_4], %3 {strides = array<i32>} : memref<2x256xf32, #tpu.memory_space<vmem>>, vector<2x256xf32>,
    return
  }
  func.func @transform_0(%arg0: i32, %arg1: i32) -> (i32, i32) {
    %c0_i32 = arith.constant 0 : i32
    return %arg1, %arg0 : i32, i32
  }
  func.func @transform_1(%arg0: i32, %arg1: i32) -> (i32, i32) {
    %c0_i32 = arith.constant 0 : i32
    %c0_i32_0 = arith.constant 0 : i32
    return %c0_i32, %arg0 : i32, i32
  }
  func.func @transform_2(%arg0: i32, %arg1: i32) -> (i32, i32) {
    %c0_i32 = arith.constant 0 : i32
    return %arg1, %arg0 : i32, i32
  }
}

</mosaic_0001>

<llo_original>
// kernel: tpu_custom_call.1
$region0: #{tpu_custom_call.1}
  #allocation0 [shape = 'u32[]', space=smem, size = 0x4, offset = 0x4, fixed_abs, tag = 'smem constant byte address 0x4 - core index']
  #allocation1 [shape = 'u32[144,128]{1,0:T(1,128)}', space=vmem, size = 0x12000, scoped, tag = 'internal scratch']
  %s0 = inlined_call_operand.hbm [shape: f32[2,256], index: 0, kind: input, shape index: {}]
  %s1 = inlined_call_operand.hbm [shape: f32[1,256], index: 1, kind: input, shape index: {}]
  %s2 = inlined_call_operand.hbm [shape: f32[2,256], index: 2, kind: output, shape index: {}]
  %s3 = sld [smem:[#allocation0]]
  $region26: #{tpu_custom_call.1} parent=0
    _
  %s5 = ssub.s32 1, %s3
  %s6 = scalar_select 0, %s5, %s3
  $region1: #{tpu_custom_call.1} parent=0
    #allocation2 [shape = 'u8[2048]{0}', space=vmem, size = 0x800, scoped, tag = 'input window, operand 0, single buffered']
    #allocation3 [shape = 's32[1]{0}', space=sflag, size = 0x4, scoped, tag = 'scoped memory for tpu_custom_call.1']
    #allocation4 [shape = 's32[1]{0}', space=sflag, size = 0x4, scoped, tag = 'scoped memory for tpu_custom_call.1']
    #allocation5 [shape = 'u8[1024]{0}', space=vmem, size = 0x400, scoped, tag = 'input window, operand 1, single buffered']
    #allocation6 [shape = 's32[1]{0}', space=sflag, size = 0x4, scoped, tag = 'scoped memory for tpu_custom_call.1']
    #allocation7 [shape = 'u8[2048]{0}', space=vmem, size = 0x800, scoped, tag = 'output window, operand 0, single buffered']
    %7 = vsyncpa [#allocation3], 0
    %8 = vsyncpa [#allocation6], 0
    %9 = vsyncpa [#allocation4], 0
    // Predicated region
    $region2: #{tpu_custom_call.1} parent=1 // pred_check
      _
    $region3: #{tpu_custom_call.1} parent=1 // pred_check_branch
      %11 = sbr.rel (0) target = $region5
    $region4: #{tpu_custom_call.1} parent=1 // pred_region
      %s13 = ssub.s32 64, 64
      %14 = vsyncadd [#allocation3], %s13
      %s16 = sshll.u32 [#allocation2], 4
      %s17 = int_to_ptr.vmem [resolvable:$true] %s16
      %19 = dma.hbm_to_vmem [thread:$0]  %s0, 64, %s17, [#allocation3]
    $region5: #{tpu_custom_call.1} parent=1 // pred_fallthru
      _
    // Predicated region
    $region6: #{tpu_custom_call.1} parent=1 // pred_check
      _
    $region7: #{tpu_custom_call.1} parent=1 // pred_check_branch
      %21 = sbr.rel (0) target = $region9
    $region8: #{tpu_custom_call.1} parent=1 // pred_region
      %s23 = ssub.s32 32, 32
      %24 = vsyncadd [#allocation6], %s23
      %s26 = sshll.u32 [#allocation5], 4
      %s27 = int_to_ptr.vmem [resolvable:$true] %s26
      %29 = dma.hbm_to_vmem [thread:$0]  %s1, 32, %s27, [#allocation6]
    $region9: #{tpu_custom_call.1} parent=1 // pred_fallthru
      _
    // Predicated region
    $region10: #{tpu_custom_call.1} parent=1 // pred_check
      _
    $region11: #{tpu_custom_call.1} parent=1 // pred_check_branch
      %31 = sbr.rel (0) target = $region13
    $region12: #{tpu_custom_call.1} parent=1 // pred_region
      %32 = dma.done [#allocation3], 64
    $region13: #{tpu_custom_call.1} parent=1 // pred_fallthru
      _
    // Predicated region
    $region14: #{tpu_custom_call.1} parent=1 // pred_check
      _
    $region15: #{tpu_custom_call.1} parent=1 // pred_check_branch
      %34 = sbr.rel (0) target = $region17
    $region16: #{tpu_custom_call.1} parent=1 // pred_region
      %35 = dma.done [#allocation6], 32
    $region17: #{tpu_custom_call.1} parent=1 // pred_fallthru
      _
    %v36 = vld [vmem:[#allocation2] sm:$0xf]
    %v37 = vld [vmem:[#allocation5] sm:$0x3]
    %v39 = vlaneseq
    %v40 = vshrl.u32 %v39, 7
    %v41 = vsub.s32 0, %v40
    %v42 = vrot.slane %v37, %v41
    %v43 = vlaneseq
    %v44 = vshrl.u32 %v43, 7
    %v45 = vsub.s32 1, %v44
    %v46 = vrot.slane %v37, %v45
    %v47 = vcombine.low %v42, %v46
    %v49 = vunpack.c.l.s4 1983009808
    %v50 = vunpack.c.0.s8 %v49
    %v51 = vlaneseq
    %v52 = vshrl.u32 %v51, 7
    %v53 = vsub.s32 %v50, %v52
    %v54 = vrot.slane %v47, %v53
    %v56 = vadd.f32 %v36, %v54
    %57 = vst [vmem:[#allocation7] sm:$0xf] %v56
    // Predicated region
    $region18: #{tpu_custom_call.1} parent=1 // pred_check
      _
    $region19: #{tpu_custom_call.1} parent=1 // pred_check_branch
      %59 = sbr.rel (0) target = $region21
    $region20: #{tpu_custom_call.1} parent=1 // pred_region
      %s61 = ssub.s32 64, 64
      %62 = vsyncadd [#allocation4], %s61
      %s64 = sshll.u32 [#allocation7], 4
      %s65 = int_to_ptr.vmem [resolvable:$true] %s64
      %67 = dma.vmem_to_hbm [thread:$0]  %s65, 64, %s2, [#allocation4]
    $region21: #{tpu_custom_call.1} parent=1 // pred_fallthru
      _
    // Predicated region
    $region22: #{tpu_custom_call.1} parent=1 // pred_check
      _
    $region23: #{tpu_custom_call.1} parent=1 // pred_check_branch
      %69 = sbr.rel (0) target = $region25
    $region24: #{tpu_custom_call.1} parent=1 // pred_region
      %70 = dma.done [#allocation4], 64
    $region25: #{tpu_custom_call.1} parent=1 // pred_fallthru
      _
    %71 = vsyncpa [#allocation3], 1
    %72 = vsyncpa [#allocation6], 1
    %73 = vsyncpa [#allocation4], 1

</llo_original>
